<compile_context>
chip_gen: v6e
topology: v6e:2x2x1
jax: 0.10.0
libtpu: 0.0.40
codegen_flags: <defaults>
</compile_context>

<pallas_src>
import math

import jax
import jax.numpy as jnp
import numpy as np
from jax.experimental import pallas as pl
from jax.experimental.pallas import tpu as pltpu

# Problem sizes (small, consistent with the module's forward).
B = 4             # batch
L = 16            # sequence length
D_MODEL = 32      # d_model
HIDDEN = 32       # hidden_dim
NUM_CLASSES = 8   # num_classes
KS = (1, 2, 3, 5)
K_MAX = max(KS)   # 5 taps
BL = B * L        # 64 rows (flattened batch*seq)
SEQ_PAD = 8       # zero-pad rows so tap-shifted slices stay in-bounds
OUT_PAD = 128     # lane-padded FC output width
BN_EPS = 1e-5
FOUR_H = 4 * HIDDEN


def skip_cnn_kernel(x_ref, w_ref, b_ref, lout_ref, inv_n_ref,
                    fcw_ref, fcb_ref, out_ref):
    xp = x_ref[...]                                       # (BL+SEQ_PAD, D) f32

    # ---- fused conv1..conv4: shift-and-accumulate over taps ----------------
    # y[r, b*H + c] = sum_j x[r + j, :] @ W_b[:, j, c]  (W_j zero where j >= k_b)
    y = jnp.dot(xp[0:BL, :], w_ref[0], preferred_element_type=jnp.float32)
    for j in range(1, K_MAX):
        y = y + jnp.dot(xp[j:j + BL, :], w_ref[j],
                        preferred_element_type=jnp.float32)
    y = y + b_ref[...]                                    # conv biases (1, 4H)

    # ---- per-branch row-validity mask (L_out differs per 32-lane group) ----
    row_pos = jax.lax.broadcasted_iota(jnp.int32, (BL, FOUR_H), 0) % L
    valid = row_pos < lout_ref[...]                       # (BL, 4H) bool

    # ---- single-pass BatchNorm statistics (training mode, biased var) ------
    inv_n = inv_n_ref[...]                                # (1, 4H) = 1/(B*L_out)
    ym = jnp.where(valid, y, 0.0)
    mean = jnp.sum(ym, axis=0, keepdims=True) * inv_n     # (1, 4H)
    ex2 = jnp.sum(ym * ym, axis=0, keepdims=True) * inv_n
    var = jnp.maximum(ex2 - mean * mean, 0.0)
    inv_std = jax.lax.rsqrt(var + BN_EPS)

    # ---- per-sample max over the sequence axis ------------------------------
    yneg = jnp.where(valid, y, -jnp.inf)
    rowmax = jnp.concatenate(
        [jnp.max(yneg[bb * L:(bb + 1) * L, :], axis=0, keepdims=True)
         for bb in range(B)], axis=0)                     # (B, 4H)

    # ---- BN (gamma=1, beta=0) + ReLU + skip (x + x) + max-pool, folded ------
    feats = 2.0 * inv_std * jnp.maximum(rowmax - mean, 0.0)   # (B, 4H)

    # ---- FC (lane-padded to 128 outputs) ------------------------------------
    out = jnp.dot(feats, fcw_ref[...], preferred_element_type=jnp.float32)
    out_ref[...] = out + fcb_ref[...]
    # TODO(synk): training-mode Dropout(p=0.2) would need pltpu.prng_*; identity here.


def skip_cnn_forward(x, kernel_inputs):
    """x: (B, L, D_MODEL) f32; kernel_inputs: packed weights/constants."""
    x2 = x.reshape(BL, D_MODEL)
    xp = jnp.pad(x2, ((0, SEQ_PAD), (0, 0)))              # zero rows for tap shifts
    vmem = pl.BlockSpec(memory_space=pltpu.MemorySpace.VMEM)
    out = pl.pallas_call(
        skip_cnn_kernel,
        out_shape=jax.ShapeDtypeStruct((B, OUT_PAD), jnp.float32),
        in_specs=[vmem] * (1 + len(kernel_inputs)),
        out_specs=vmem,
    )(xp, *kernel_inputs)
    return out[:, :NUM_CLASSES]


def init_params(key):
    """Deterministic init matching the module's __init__ shapes / schemes."""
    keys = jax.random.split(key, 2 * len(KS) + 2)
    params = []
    gain = math.sqrt(2.0)  # kaiming 'relu' gain
    idx = 0
    for k in KS:
        fan_in = D_MODEL * k
        bw = gain * math.sqrt(3.0 / fan_in)               # kaiming_uniform_
        w_torch = jax.random.uniform(keys[idx], (HIDDEN, D_MODEL, k),
                                     minval=-bw, maxval=bw, dtype=jnp.float32)
        idx += 1
        bb = 1.0 / math.sqrt(fan_in)                      # default conv bias init
        bias = jax.random.uniform(keys[idx], (1, HIDDEN),
                                  minval=-bb, maxval=bb, dtype=jnp.float32)
        idx += 1
        # (H, D, k) -> (k*D, H); row order j*D + c matches tap/channel order.
        w = jnp.transpose(w_torch, (2, 1, 0)).reshape(k * D_MODEL, HIDDEN)
        params += [w, bias]

    fan_in = FOUR_H
    bw = math.sqrt(6.0 / (fan_in + NUM_CLASSES))          # xavier_uniform_
    fcw_torch = jax.random.uniform(keys[idx], (NUM_CLASSES, fan_in),
                                   minval=-bw, maxval=bw, dtype=jnp.float32)
    idx += 1
    bb = 1.0 / math.sqrt(fan_in)
    fcb = jax.random.uniform(keys[idx], (1, NUM_CLASSES),
                             minval=-bb, maxval=bb, dtype=jnp.float32)
    params += [jnp.transpose(fcw_torch), fcb]
    return params


def pack_kernel_inputs(params):
    """Pack per-branch conv weights into fused per-tap (D, 4H) matrices etc."""
    W = np.zeros((K_MAX, D_MODEL, FOUR_H), np.float32)
    bias = np.zeros((1, FOUR_H), np.float32)
    lout = np.zeros((1, FOUR_H), np.int32)
    inv_n = np.zeros((1, FOUR_H), np.float32)
    for bidx, k in enumerate(KS):
        w = np.asarray(params[2 * bidx])                  # (k*D, H)
        b = np.asarray(params[2 * bidx + 1])              # (1, H)
        sl = slice(bidx * HIDDEN, (bidx + 1) * HIDDEN)
        for j in range(k):
            W[j, :, sl] = w[j * D_MODEL:(j + 1) * D_MODEL, :]
        bias[0, sl] = b[0]
        lo = L - k + 1
        lout[0, sl] = lo
        inv_n[0, sl] = 1.0 / float(B * lo)
    fcw = np.zeros((FOUR_H, OUT_PAD), np.float32)
    fcw[:, :NUM_CLASSES] = np.asarray(params[8])          # (4H, C)
    fcb = np.zeros((1, OUT_PAD), np.float32)
    fcb[0, :NUM_CLASSES] = np.asarray(params[9])[0]
    return [jnp.asarray(W), jnp.asarray(bias), jnp.asarray(lout),
            jnp.asarray(inv_n), jnp.asarray(fcw), jnp.asarray(fcb)]


def reference(x, params):
    """Pure-JAX reference mirroring the PyTorch forward (train-mode BN, eval dropout)."""
    w1, b1, w2, b2, w3, b3, w4, b4, fcw, fcb = params

    def branch(k, w, b):
        l_out = L - k + 1
        cols = jnp.concatenate([x[:, j:j + l_out, :] for j in range(k)], axis=-1)
        y = jnp.einsum('bld,dh->blh', cols, w) + b[None]
        mean = jnp.mean(y, axis=(0, 1), keepdims=True)
        var = jnp.mean((y - mean) ** 2, axis=(0, 1), keepdims=True)
        y = (y - mean) / jnp.sqrt(var + BN_EPS)
        y = jnp.maximum(y, 0.0)
        y = y + y
        return jnp.max(y, axis=1)

    feats = jnp.concatenate([branch(1, w1, b1), branch(2, w2, b2),
                             branch(3, w3, b3), branch(5, w4, b4)], axis=-1)
    return feats @ fcw + fcb


if __name__ == "__main__":
    key = jax.random.PRNGKey(0)
    kx, kp = jax.random.split(key)
    x = jax.random.normal(kx, (B, L, D_MODEL), dtype=jnp.float32)
    params = init_params(kp)
    kernel_inputs = pack_kernel_inputs(params)

    out = skip_cnn_forward(x, kernel_inputs)
    out = jax.block_until_ready(out)
    assert out.shape == (B, NUM_CLASSES)

    ref = reference(x, params)
    np.testing.assert_allclose(np.asarray(out), np.asarray(ref),
                               atol=1e-3, rtol=1e-3)
    print("KERNEL_OK")
</pallas_src>

<mosaic_0001>
module attributes {stable_mosaic.version = 11 : i64} {
  func.func @skip_cnn_kernel(%arg0: memref<72x32xf32, #tpu.memory_space<vmem>>, %arg1: memref<5x32x128xf32, #tpu.memory_space<vmem>>, %arg2: memref<1x128xf32, #tpu.memory_space<vmem>>, %arg3: memref<1x128xi32, #tpu.memory_space<vmem>>, %arg4: memref<1x128xf32, #tpu.memory_space<vmem>>, %arg5: memref<128x128xf32, #tpu.memory_space<vmem>>, %arg6: memref<1x128xf32, #tpu.memory_space<vmem>>, %arg7: memref<4x128xf32, #tpu.memory_space<vmem>>) attributes {dimension_semantics = [], scalar_prefetch = 0 : i64, scratch_operands = 0 : i64, tpu.core_type = #tpu.core_type<tc>} {
    %c0 = arith.constant 0 : index
    %c0_0 = arith.constant 0 : index
    %0 = vector.load %arg0[%c0, %c0_0] : memref<72x32xf32, #tpu.memory_space<vmem>>, vector<72x32xf32>
    %1 = vector.extract_strided_slice %0 {offsets = [0, 0], sizes = [64, 32], strides = [1, 1]} : vector<72x32xf32> to vector<64x32xf32>
    %c0_1 = arith.constant 0 : index
    %c0_2 = arith.constant 0 : index
    %c0_3 = arith.constant 0 : index
    %2 = vector.load %arg1[%c0_1, %c0_2, %c0_3] : memref<5x32x128xf32, #tpu.memory_space<vmem>>, vector<1x32x128xf32>
    %3 = vector.shape_cast %2 : vector<1x32x128xf32> to vector<32x128xf32>
    %cst = arith.constant dense<0.000000e+00> : vector<64x128xf32>
    %4 = tpu.matmul %1, %3, %cst {dimension_numbers = #tpu.dot_dimension_numbers<[1], [0], [0], [1], [0, 0, 1, 1], [], []>} : vector<64x32xf32>, vector<32x128xf32>, vector<64x128xf32> -> vector<64x128xf32>
    %5 = vector.extract_strided_slice %0 {offsets = [1, 0], sizes = [64, 32], strides = [1, 1]} : vector<72x32xf32> to vector<64x32xf32>
    %c1 = arith.constant 1 : index
    %c0_4 = arith.constant 0 : index
    %c0_5 = arith.constant 0 : index
    %6 = vector.load %arg1[%c1, %c0_4, %c0_5] : memref<5x32x128xf32, #tpu.memory_space<vmem>>, vector<1x32x128xf32>
    %7 = vector.shape_cast %6 : vector<1x32x128xf32> to vector<32x128xf32>
    %cst_6 = arith.constant dense<0.000000e+00> : vector<64x128xf32>
    %8 = tpu.matmul %5, %7, %cst_6 {dimension_numbers = #tpu.dot_dimension_numbers<[1], [0], [0], [1], [0, 0, 1, 1], [], []>} : vector<64x32xf32>, vector<32x128xf32>, vector<64x128xf32> -> vector<64x128xf32>
    %9 = arith.addf %4, %8 : vector<64x128xf32>
    %10 = vector.extract_strided_slice %0 {offsets = [2, 0], sizes = [64, 32], strides = [1, 1]} : vector<72x32xf32> to vector<64x32xf32>
    %c2 = arith.constant 2 : index
    %c0_7 = arith.constant 0 : index
    %c0_8 = arith.constant 0 : index
    %11 = vector.load %arg1[%c2, %c0_7, %c0_8] : memref<5x32x128xf32, #tpu.memory_space<vmem>>, vector<1x32x128xf32>
    %12 = vector.shape_cast %11 : vector<1x32x128xf32> to vector<32x128xf32>
    %cst_9 = arith.constant dense<0.000000e+00> : vector<64x128xf32>
    %13 = tpu.matmul %10, %12, %cst_9 {dimension_numbers = #tpu.dot_dimension_numbers<[1], [0], [0], [1], [0, 0, 1, 1], [], []>} : vector<64x32xf32>, vector<32x128xf32>, vector<64x128xf32> -> vector<64x128xf32>
    %14 = arith.addf %9, %13 : vector<64x128xf32>
    %15 = vector.extract_strided_slice %0 {offsets = [3, 0], sizes = [64, 32], strides = [1, 1]} : vector<72x32xf32> to vector<64x32xf32>
    %c3 = arith.constant 3 : index
    %c0_10 = arith.constant 0 : index
    %c0_11 = arith.constant 0 : index
    %16 = vector.load %arg1[%c3, %c0_10, %c0_11] : memref<5x32x128xf32, #tpu.memory_space<vmem>>, vector<1x32x128xf32>
    %17 = vector.shape_cast %16 : vector<1x32x128xf32> to vector<32x128xf32>
    %cst_12 = arith.constant dense<0.000000e+00> : vector<64x128xf32>
    %18 = tpu.matmul %15, %17, %cst_12 {dimension_numbers = #tpu.dot_dimension_numbers<[1], [0], [0], [1], [0, 0, 1, 1], [], []>} : vector<64x32xf32>, vector<32x128xf32>, vector<64x128xf32> -> vector<64x128xf32>
    %19 = arith.addf %14, %18 : vector<64x128xf32>
    %20 = vector.extract_strided_slice %0 {offsets = [4, 0], sizes = [64, 32], strides = [1, 1]} : vector<72x32xf32> to vector<64x32xf32>
    %c4 = arith.constant 4 : index
    %c0_13 = arith.constant 0 : index
    %c0_14 = arith.constant 0 : index
    %21 = vector.load %arg1[%c4, %c0_13, %c0_14] : memref<5x32x128xf32, #tpu.memory_space<vmem>>, vector<1x32x128xf32>
    %22 = vector.shape_cast %21 : vector<1x32x128xf32> to vector<32x128xf32>
    %cst_15 = arith.constant dense<0.000000e+00> : vector<64x128xf32>
    %23 = tpu.matmul %20, %22, %cst_15 {dimension_numbers = #tpu.dot_dimension_numbers<[1], [0], [0], [1], [0, 0, 1, 1], [], []>} : vector<64x32xf32>, vector<32x128xf32>, vector<64x128xf32> -> vector<64x128xf32>
    %24 = arith.addf %19, %23 : vector<64x128xf32>
    %c0_16 = arith.constant 0 : index
    %c0_17 = arith.constant 0 : index
    %25 = vector.load %arg2[%c0_16, %c0_17] : memref<1x128xf32, #tpu.memory_space<vmem>>, vector<1x128xf32>
    %26 = vector.broadcast %25 : vector<1x128xf32> to vector<64x128xf32>
    %27 = arith.addf %24, %26 : vector<64x128xf32>
    %28 = tpu.iota {dimensions = array<i32: 0>} : vector<64x128xi32>
    %c16_i32 = arith.constant 16 : i32
    %c0_i32 = arith.constant 0 : i32
    %29 = arith.cmpi eq, %c16_i32, %c0_i32 : i32
    %c1_i32 = arith.constant 1 : i32
    %30 = arith.select %29, %c1_i32, %c16_i32 : i32
    %31 = vector.broadcast %30 : i32 to vector<64x128xi32>
    %32 = arith.remsi %28, %31 : vector<64x128xi32>
    %c0_i32_18 = arith.constant 0 : i32
    %33 = vector.broadcast %c0_i32_18 : i32 to vector<64x128xi32>
    %34 = arith.cmpi ne, %32, %33 : vector<64x128xi32>
    %c0_i32_19 = arith.constant 0 : i32
    %35 = vector.broadcast %c0_i32_19 : i32 to vector<64x128xi32>
    %36 = arith.cmpi slt, %32, %35 : vector<64x128xi32>
    %c0_i32_20 = arith.constant 0 : i32
    %37 = arith.cmpi slt, %30, %c0_i32_20 : i32
    %38 = vector.broadcast %37 : i1 to vector<64x128xi1>
    %39 = vector.broadcast %38 : vector<64x128xi1> to vector<64x128xi1>
    %40 = arith.xori %36, %39 : vector<64x128xi1>
    %41 = arith.andi %40, %34 : vector<64x128xi1>
    %42 = vector.broadcast %30 : i32 to vector<64x128xi32>
    %43 = arith.addi %32, %42 : vector<64x128xi32>
    %44 = arith.select %41, %43, %32 : vector<64x128xi1>, vector<64x128xi32>
    %c0_21 = arith.constant 0 : index
    %c0_22 = arith.constant 0 : index
    %45 = vector.load %arg3[%c0_21, %c0_22] : memref<1x128xi32, #tpu.memory_space<vmem>>, vector<1x128xi32>
    %46 = vector.broadcast %45 : vector<1x128xi32> to vector<64x128xi32>
    %47 = arith.cmpi slt, %44, %46 : vector<64x128xi32>
    %c0_23 = arith.constant 0 : index
    %c0_24 = arith.constant 0 : index
    %48 = vector.load %arg4[%c0_23, %c0_24] : memref<1x128xf32, #tpu.memory_space<vmem>>, vector<1x128xf32>
    %cst_25 = arith.constant 0.000000e+00 : f32
    %49 = vector.broadcast %cst_25 : f32 to vector<64x128xf32>
    %50 = arith.select %47, %27, %49 : vector<64x128xi1>, vector<64x128xf32>
    %cst_26 = arith.constant dense<0.000000e+00> : vector<128xf32>
    %51 = vector.multi_reduction <add>, %50, %cst_26 [0] : vector<64x128xf32> to vector<128xf32>
    %52 = vector.shape_cast %51 : vector<128xf32> to vector<1x128xf32>
    %53 = arith.mulf %52, %48 : vector<1x128xf32>
    %54 = arith.mulf %50, %50 : vector<64x128xf32>
    %cst_27 = arith.constant dense<0.000000e+00> : vector<128xf32>
    %55 = vector.multi_reduction <add>, %54, %cst_27 [0] : vector<64x128xf32> to vector<128xf32>
    %56 = vector.shape_cast %55 : vector<128xf32> to vector<1x128xf32>
    %57 = arith.mulf %56, %48 : vector<1x128xf32>
    %58 = arith.mulf %53, %53 : vector<1x128xf32>
    %59 = arith.subf %57, %58 : vector<1x128xf32>
    %cst_28 = arith.constant 0.000000e+00 : f32
    %60 = vector.broadcast %cst_28 : f32 to vector<1x128xf32>
    %61 = arith.maximumf %59, %60 : vector<1x128xf32>
    %cst_29 = arith.constant 9.99999974E-6 : f32
    %62 = vector.broadcast %cst_29 : f32 to vector<1x128xf32>
    %63 = arith.addf %61, %62 : vector<1x128xf32>
    %64 = math.rsqrt %63 : vector<1x128xf32>
    %cst_30 = arith.constant 0xFF800000 : f32
    %65 = vector.broadcast %cst_30 : f32 to vector<64x128xf32>
    %66 = arith.select %47, %27, %65 : vector<64x128xi1>, vector<64x128xf32>
    %67 = vector.extract_strided_slice %66 {offsets = [0, 0], sizes = [16, 128], strides = [1, 1]} : vector<64x128xf32> to vector<16x128xf32>
    %cst_31 = arith.constant dense<0xFF800000> : vector<128xf32>
    %68 = vector.multi_reduction <maximumf>, %67, %cst_31 [0] : vector<16x128xf32> to vector<128xf32>
    %69 = vector.shape_cast %68 : vector<128xf32> to vector<1x128xf32>
    %70 = vector.extract_strided_slice %66 {offsets = [16, 0], sizes = [16, 128], strides = [1, 1]} : vector<64x128xf32> to vector<16x128xf32>
    %cst_32 = arith.constant dense<0xFF800000> : vector<128xf32>
    %71 = vector.multi_reduction <maximumf>, %70, %cst_32 [0] : vector<16x128xf32> to vector<128xf32>
    %72 = vector.shape_cast %71 : vector<128xf32> to vector<1x128xf32>
    %73 = vector.extract_strided_slice %66 {offsets = [32, 0], sizes = [16, 128], strides = [1, 1]} : vector<64x128xf32> to vector<16x128xf32>
    %cst_33 = arith.constant dense<0xFF800000> : vector<128xf32>
    %74 = vector.multi_reduction <maximumf>, %73, %cst_33 [0] : vector<16x128xf32> to vector<128xf32>
    %75 = vector.shape_cast %74 : vector<128xf32> to vector<1x128xf32>
    %76 = vector.extract_strided_slice %66 {offsets = [48, 0], sizes = [16, 128], strides = [1, 1]} : vector<64x128xf32> to vector<16x128xf32>
    %cst_34 = arith.constant dense<0xFF800000> : vector<128xf32>
    %77 = vector.multi_reduction <maximumf>, %76, %cst_34 [0] : vector<16x128xf32> to vector<128xf32>
    %78 = vector.shape_cast %77 : vector<128xf32> to vector<1x128xf32>
    %79 = tpu.concatenate %69, %72, %75, %78 in 0 : vector<1x128xf32>, vector<1x128xf32>, vector<1x128xf32>, vector<1x128xf32> -> vector<4x128xf32>
    %cst_35 = arith.constant 2.000000e+00 : f32
    %80 = vector.broadcast %cst_35 : f32 to vector<1x128xf32>
    %81 = arith.mulf %80, %64 : vector<1x128xf32>
    %82 = vector.broadcast %53 : vector<1x128xf32> to vector<4x128xf32>
    %83 = arith.subf %79, %82 : vector<4x128xf32>
    %cst_36 = arith.constant 0.000000e+00 : f32
    %84 = vector.broadcast %cst_36 : f32 to vector<4x128xf32>
    %85 = arith.maximumf %83, %84 : vector<4x128xf32>
    %86 = vector.broadcast %81 : vector<1x128xf32> to vector<4x128xf32>
    %87 = arith.mulf %86, %85 : vector<4x128xf32>
    %c0_37 = arith.constant 0 : index
    %c0_38 = arith.constant 0 : index
    %88 = vector.load %arg5[%c0_37, %c0_38] : memref<128x128xf32, #tpu.memory_space<vmem>>, vector<128x128xf32>
    %cst_39 = arith.constant dense<0.000000e+00> : vector<4x128xf32>
    %89 = tpu.matmul %87, %88, %cst_39 {dimension_numbers = #tpu.dot_dimension_numbers<[1], [0], [0], [1], [0, 0, 1, 1], [], []>} : vector<4x128xf32>, vector<128x128xf32>, vector<4x128xf32> -> vector<4x128xf32>
    %c0_40 = arith.constant 0 : index
    %c0_41 = arith.constant 0 : index
    %90 = vector.load %arg6[%c0_40, %c0_41] : memref<1x128xf32, #tpu.memory_space<vmem>>, vector<1x128xf32>
    %91 = vector.broadcast %90 : vector<1x128xf32> to vector<4x128xf32>
    %92 = arith.addf %89, %91 : vector<4x128xf32>
    %c0_42 = arith.constant 0 : index
    %c0_43 = arith.constant 0 : index
    %93 = vector.load %arg7[%c0_42, %c0_43] : memref<4x128xf32, #tpu.memory_space<vmem>>, vector<4x128xf32>
    tpu.vector_store %arg7[%c0_42, %c0_43], %92 {strides = array<i32>} : memref<4x128xf32, #tpu.memory_space<vmem>>, vector<4x128xf32>,
    return
  }
}

</mosaic_0001>

<llo_original>
// kernel: tpu_custom_call.1
$region0: #{tpu_custom_call.1}
  #allocation0 [shape = 'u32[]', space=smem, size = 0x4, offset = 0x4, fixed_abs, tag = 'smem constant byte address 0x4 - core index']
  #allocation1 [shape = 'u32[144,128]{1,0:T(1,128)}', space=vmem, size = 0x12000, scoped, tag = 'internal scratch']
  %s0 = inlined_call_operand.vmem [shape: f32[72,32], index: 0, kind: input, shape index: {}]
  %s1 = inlined_call_operand.hbm [shape: f32[5,32,128], index: 1, kind: input, shape index: {}]
  %s2 = inlined_call_operand.vmem [shape: f32[1,128], index: 2, kind: input, shape index: {}]
  %s3 = inlined_call_operand.vmem [shape: s32[1,128], index: 3, kind: input, shape index: {}]
  %s4 = inlined_call_operand.vmem [shape: f32[1,128], index: 4, kind: input, shape index: {}]
  %s5 = inlined_call_operand.hbm [shape: f32[128,128], index: 5, kind: input, shape index: {}]
  %s6 = inlined_call_operand.vmem [shape: f32[1,128], index: 6, kind: input, shape index: {}]
  %s7 = inlined_call_operand.hbm [shape: f32[4,128], index: 7, kind: output, shape index: {}]
  %s8 = sld [smem:[#allocation0]]
  $region46: #{tpu_custom_call.1} parent=0
    _
  %s10 = ssub.s32 1, %s8
  %s11 = scalar_select 0, %s10, %s8
  $region1: #{tpu_custom_call.1} parent=0
    #allocation2 [shape = 'u8[81920]{0}', space=vmem, size = 0x14000, scoped, tag = 'input window, operand 1, single buffered']
    #allocation3 [shape = 's32[1]{0}', space=sflag, size = 0x4, scoped, tag = 'scoped memory for tpu_custom_call.1']
    #allocation4 [shape = 's32[1]{0}', space=sflag, size = 0x4, scoped, tag = 'scoped memory for tpu_custom_call.1']
    #allocation5 [shape = 'u8[65536]{0}', space=vmem, size = 0x10000, scoped, tag = 'input window, operand 5, single buffered']
    #allocation6 [shape = 's32[1]{0}', space=sflag, size = 0x4, scoped, tag = 'scoped memory for tpu_custom_call.1']
    #allocation7 [shape = 'u8[2048]{0}', space=vmem, size = 0x800, scoped, tag = 'output window, operand 0, single buffered']
    %12 = vsyncpa [#allocation3], 0
    %13 = vsyncpa [#allocation6], 0
    %14 = vsyncpa [#allocation4], 0
    // Predicated region
    $region2: #{tpu_custom_call.1} parent=1 // pred_check
      _
    $region3: #{tpu_custom_call.1} parent=1 // pred_check_branch
      %16 = sbr.rel (0) target = $region5
    $region4: #{tpu_custom_call.1} parent=1 // pred_region
      _
    $region5: #{tpu_custom_call.1} parent=1 // pred_fallthru
      _
    // Predicated region
    $region6: #{tpu_custom_call.1} parent=1 // pred_check
      _
    $region7: #{tpu_custom_call.1} parent=1 // pred_check_branch
      %18 = sbr.rel (0) target = $region9
    $region8: #{tpu_custom_call.1} parent=1 // pred_region
      %s20 = ssub.s32 2560, 2560
      %21 = vsyncadd [#allocation3], %s20
      %s22 = sshll.u32 [#allocation2], 4
      %s23 = int_to_ptr.vmem [resolvable:$true] %s22
      %28 = dma.hbm_to_vmem [thread:$0]  %s1, 2560, %s23, [#allocation3], 128, 128, 8
    $region9: #{tpu_custom_call.1} parent=1 // pred_fallthru
      _
    // Predicated region
    $region10: #{tpu_custom_call.1} parent=1 // pred_check
      _
    $region11: #{tpu_custom_call.1} parent=1 // pred_check_branch
      %30 = sbr.rel (0) target = $region13
    $region12: #{tpu_custom_call.1} parent=1 // pred_region
      _
    $region13: #{tpu_custom_call.1} parent=1 // pred_fallthru
      _
    // Predicated region
    $region14: #{tpu_custom_call.1} parent=1 // pred_check
      _
    $region15: #{tpu_custom_call.1} parent=1 // pred_check_branch
      %32 = sbr.rel (0) target = $region17
    $region16: #{tpu_custom_call.1} parent=1 // pred_region
      _
    $region17: #{tpu_custom_call.1} parent=1 // pred_fallthru
      _
    // Predicated region
    $region18: #{tpu_custom_call.1} parent=1 // pred_check
      _
    $region19: #{tpu_custom_call.1} parent=1 // pred_check_branch
      %34 = sbr.rel (0) target = $region21
    $region20: #{tpu_custom_call.1} parent=1 // pred_region
      _
    $region21: #{tpu_custom_call.1} parent=1 // pred_fallthru
      _
    // Predicated region
    $region22: #{tpu_custom_call.1} parent=1 // pred_check
      _
    $region23: #{tpu_custom_call.1} parent=1 // pred_check_branch
      %36 = sbr.rel (0) target = $region25
    $region24: #{tpu_custom_call.1} parent=1 // pred_region
      %s38 = ssub.s32 2048, 2048
      %39 = vsyncadd [#allocation6], %s38
      %s40 = sshll.u32 [#allocation5], 4
      %s41 = int_to_ptr.vmem [resolvable:$true] %s40
      %46 = dma.hbm_to_vmem [thread:$0]  %s5, 2048, %s41, [#allocation6], 128, 128, 8
    $region25: #{tpu_custom_call.1} parent=1 // pred_fallthru
      _
    // Predicated region
    $region26: #{tpu_custom_call.1} parent=1 // pred_check
      _
    $region27: #{tpu_custom_call.1} parent=1 // pred_check_branch
      %48 = sbr.rel (0) target = $region29
    $region28: #{tpu_custom_call.1} parent=1 // pred_region
      _
    $region29: #{tpu_custom_call.1} parent=1 // pred_fallthru
      _
    // Predicated region
    $region30: #{tpu_custom_call.1} parent=1 // pred_check
      _
    $region31: #{tpu_custom_call.1} parent=1 // pred_check_branch
      %50 = sbr.rel (0) target = $region33
    $region32: #{tpu_custom_call.1} parent=1 // pred_region
      %51 = dma.done [#allocation3], 2560
    $region33: #{tpu_custom_call.1} parent=1 // pred_fallthru
      _
    // Predicated region
    $region34: #{tpu_custom_call.1} parent=1 // pred_check
      _
    $region35: #{tpu_custom_call.1} parent=1 // pred_check_branch
      %53 = sbr.rel (0) target = $region37
    $region36: #{tpu_custom_call.1} parent=1 // pred_region
      %54 = dma.done [#allocation6], 2048
    $region37: #{tpu_custom_call.1} parent=1 // pred_fallthru
      _
    %v55 = vld [vmem:[%s0] sm:$0xff]
    %v56 = vld [vmem:[%s0 + $0x8] sm:$0xff]
    %v57 = vld [vmem:[%s0 + $0x10] sm:$0xff]
    %v58 = vld [vmem:[%s0 + $0x18] sm:$0xff]
    %v59 = vld [vmem:[%s0 + $0x20] sm:$0xff]
    %v60 = vld [vmem:[%s0 + $0x28] sm:$0xff]
    %v61 = vld [vmem:[%s0 + $0x30] sm:$0xff]
    %v62 = vld [vmem:[%s0 + $0x38] sm:$0xff]
    %v63 = vld [vmem:[%s0 + $0x40] sm:$0xff]
    %v64 = vld [vmem:[#allocation2] sm:$0xff]
    %v65 = vld [vmem:[#allocation2 + $0x8] sm:$0xff]
    %v66 = vld [vmem:[#allocation2 + $0x10] sm:$0xff]
    %v67 = vld [vmem:[#allocation2 + $0x18] sm:$0xff]
    %s68 = scalar_lea.vmem [#allocation2], 32
    %v69 = vld [vmem:[%s68] sm:$0xff]
    %v70 = vld [vmem:[%s68 + $0x8] sm:$0xff]
    %v71 = vld [vmem:[%s68 + $0x10] sm:$0xff]
    %v72 = vld [vmem:[%s68 + $0x18] sm:$0xff]
    %vm82 = vcmask 1046528
    %v83 = vrot.slane %v55, 1
    %v84 = vrot.slane %v56, 1
    %v85 = vsel %vm82, %v83, %v84
    %v86 = vrot.slane %v57, 1
    %v87 = vsel %vm82, %v84, %v86
    %v88 = vrot.slane %v58, 1
    %v89 = vsel %vm82, %v86, %v88
    %v90 = vrot.slane %v59, 1
    %v91 = vsel %vm82, %v88, %v90
    %v92 = vrot.slane %v60, 1
    %v93 = vsel %vm82, %v90, %v92
    %v94 = vrot.slane %v61, 1
    %v95 = vsel %vm82, %v92, %v94
    %v96 = vrot.slane %v62, 1
    %v97 = vsel %vm82, %v94, %v96
    %v98 = vrot.slane %v63, 1
    %v99 = vsel %vm82, %v96, %v98
    %vm100 = vcmask 261120
    %v101 = vsel %vm100, %v85, 0
    %v103 = vsel %vm100, %v87, 0
    %v105 = vsel %vm100, %v89, 0
    %v107 = vsel %vm100, %v91, 0
    %v109 = vsel %vm100, %v93, 0
    %v111 = vsel %vm100, %v95, 0
    %v113 = vsel %vm100, %v97, 0
    %v115 = vsel %vm100, %v99, 0
    %117 = vmatprep.subr.mxu0 0.0
    %118 = vmatpush1.msra.mxu0 0.0
    %119 = vmatprep.subr.mxu0 0.0
    %120 = vmatpush1.msra.mxu0 0.0
    %121 = vmatprep.subr.mxu0 0.0
    %122 = vmatpush1.msra.mxu0 0.0
    %123 = vmatprep.subr.mxu0 0.0
    %124 = vmatpush1.msra.mxu0 0.0
    %125 = vmatprep.subr.mxu0 0.0
    %126 = vmatpush1.msra.mxu0 0.0
    %127 = vmatprep.subr.mxu0 0.0
    %128 = vmatpush1.msra.mxu0 0.0
    %129 = vmatprep.subr.mxu0 0.0
    %130 = vmatpush1.msra.mxu0 0.0
    %131 = vmatprep.subr.mxu0 0.0
    %132 = vmatpush1.msra.mxu0 0.0
    %133 = vmatprep.subr.mxu0 0.0
    %134 = vmatpush1.msra.mxu0 0.0
    %135 = vmatprep.subr.mxu0 0.0
    %136 = vmatpush1.msra.mxu0 0.0
    %137 = vmatprep.subr.mxu0 0.0
    %138 = vmatpush1.msra.mxu0 0.0
    %139 = vmatprep.subr.mxu0 0.0
    %140 = vmatpush1.msra.mxu0 0.0
    %141 = vmatprep.subr.mxu0 0.0
    %142 = vmatpush1.msra.mxu0 %v72
    %143 = vmatprep.subr.mxu0 0.0
    %144 = vmatpush1.msra.mxu0 %v71
    %145 = vmatprep.subr.mxu0 0.0
    %146 = vmatpush1.msra.mxu0 %v70
    %147 = vmatprep.subr.mxu0 0.0
    %148 = vmatpush1.msra.mxu0 %v69
    %149 = vmatprep.subr.mxu0 0.0
    %150 = vmatpush2.msra.mxu0 0.0
    %151 = vmatprep.subr.mxu0 0.0
    %152 = vmatpush2.msra.mxu0 0.0
    %153 = vmatprep.subr.mxu0 0.0
    %154 = vmatpush2.msra.mxu0 0.0
    %155 = vmatprep.subr.mxu0 0.0
    %156 = vmatpush2.msra.mxu0 0.0
    %157 = vmatprep.subr.mxu0 0.0
    %158 = vmatpush2.msra.mxu0 0.0
    %159 = vmatprep.subr.mxu0 0.0
    %160 = vmatpush2.msra.mxu0 0.0
    %161 = vmatprep.subr.mxu0 0.0
    %162 = vmatpush2.msra.mxu0 0.0
    %163 = vmatprep.subr.mxu0 0.0
    %164 = vmatpush2.msra.mxu0 0.0
    %165 = vmatprep.subr.mxu0 0.0
    %166 = vmatpush2.msra.mxu0 0.0
    %167 = vmatprep.subr.mxu0 0.0
    %168 = vmatpush2.msra.mxu0 0.0
    %169 = vmatprep.subr.mxu0 0.0
    %170 = vmatpush2.msra.mxu0 0.0
    %171 = vmatprep.subr.mxu0 0.0
    %172 = vmatpush2.msra.mxu0 0.0
    %173 = vmatprep.subr.mxu0 0.0
    %174 = vmatpush2.msra.mxu0 0.0
    %175 = vmatprep.subr.mxu0 0.0
    %176 = vmatpush2.msra.mxu0 0.0
    %177 = vmatprep.subr.mxu0 0.0
    %178 = vmatpush2.msra.mxu0 0.0
    %179 = vmatprep.subr.mxu0 0.0
    %180 = vmatpush2.msra.mxu0 0.0
    %181 = vmatprep.mubr.f32.mxu0 0.0
    %182 = vmatmul.mubr.f32.gmra.mxu0 %v101
    %v183 = vpop.f32.mrf.mxu0
    %v184 = vadd.f32 0.0, %v183
    %v185 = vpop.f32.mrf.mxu0
    %186 = vmatprep.mubr.f32.mxu0 0.0
    %187 = vmatmul.mubr.f32.gmra.mxu0 %v103
    %v188 = vpop.f32.mrf.mxu0
    %v189 = vadd.f32 0.0, %v188
    %v190 = vpop.f32.mrf.mxu0
    %191 = vmatprep.mubr.f32.mxu0 0.0
    %192 = vmatmul.mubr.f32.gmra.mxu0 %v105
    %v193 = vpop.f32.mrf.mxu0
    %v194 = vadd.f32 0.0, %v193
    %v195 = vpop.f32.mrf.mxu0
    %196 = vmatprep.mubr.f32.mxu0 0.0
    %197 = vmatmul.mubr.f32.gmra.mxu0 %v107
    %v198 = vpop.f32.mrf.mxu0
    %v199 = vadd.f32 0.0, %v198
    %v200 = vpop.f32.mrf.mxu0
    %201 = vmatprep.mubr.f32.mxu0 0.0
    %202 = vmatmul.mubr.f32.gmra.mxu0 %v109
    %v203 = vpop.f32.mrf.mxu0
    %v204 = vadd.f32 0.0, %v203
    %v205 = vpop.f32.mrf.mxu0
    %206 = vmatprep.mubr.f32.mxu0 0.0
    %207 = vmatmul.mubr.f32.gmra.mxu0 %v111
    %v208 = vpop.f32.mrf.mxu0
    %v209 = vadd.f32 0.0, %v208
    %v210 = vpop.f32.mrf.mxu0
    %211 = vmatprep.mubr.f32.mxu0 0.0
    %212 = vmatmul.mubr.f32.gmra.mxu0 %v113
    %v213 = vpop.f32.mrf.mxu0
    %v214 = vadd.f32 0.0, %v213
    %v215 = vpop.f32.mrf.mxu0
    %216 = vmatprep.mubr.f32.mxu0 0.0
    %217 = vmatmul.mubr.f32.gmra.mxu0 %v115
    %v218 = vpop.f32.mrf.mxu0
    %v219 = vadd.f32 0.0, %v218
    %v220 = vpop.f32.mrf.mxu0
    %221 = vdwg.mxu0
    %v222 = vsel %vm100, %v55, 0
    %v224 = vsel %vm100, %v56, 0
    %v226 = vsel %vm100, %v57, 0
    %v228 = vsel %vm100, %v58, 0
    %v230 = vsel %vm100, %v59, 0
    %v232 = vsel %vm100, %v60, 0
    %v234 = vsel %vm100, %v61, 0
    %v236 = vsel %vm100, %v62, 0
    %238 = vmatprep.subr.mxu0 0.0
    %239 = vmatpush1.msra.mxu0 0.0
    %240 = vmatprep.subr.mxu0 0.0
    %241 = vmatpush1.msra.mxu0 0.0
    %242 = vmatprep.subr.mxu0 0.0
    %243 = vmatpush1.msra.mxu0 0.0
    %244 = vmatprep.subr.mxu0 0.0
    %245 = vmatpush1.msra.mxu0 0.0
    %246 = vmatprep.subr.mxu0 0.0
    %247 = vmatpush1.msra.mxu0 0.0
    %248 = vmatprep.subr.mxu0 0.0
    %249 = vmatpush1.msra.mxu0 0.0
    %250 = vmatprep.subr.mxu0 0.0
    %251 = vmatpush1.msra.mxu0 0.0
    %252 = vmatprep.subr.mxu0 0.0
    %253 = vmatpush1.msra.mxu0 0.0
    %254 = vmatprep.subr.mxu0 0.0
    %255 = vmatpush1.msra.mxu0 0.0
    %256 = vmatprep.subr.mxu0 0.0
    %257 = vmatpush1.msra.mxu0 0.0
    %258 = vmatprep.subr.mxu0 0.0
    %259 = vmatpush1.msra.mxu0 0.0
    %260 = vmatprep.subr.mxu0 0.0
    %261 = vmatpush1.msra.mxu0 0.0
    %262 = vmatprep.subr.mxu0 0.0
    %263 = vmatpush1.msra.mxu0 %v67
    %264 = vmatprep.subr.mxu0 0.0
    %265 = vmatpush1.msra.mxu0 %v66
    %266 = vmatprep.subr.mxu0 0.0
    %267 = vmatpush1.msra.mxu0 %v65
    %268 = vmatprep.subr.mxu0 0.0
    %269 = vmatpush1.msra.mxu0 %v64
    %270 = vmatprep.subr.mxu0 0.0
    %271 = vmatpush2.msra.mxu0 0.0
    %272 = vmatprep.subr.mxu0 0.0
    %273 = vmatpush2.msra.mxu0 0.0
    %274 = vmatprep.subr.mxu0 0.0
    %275 = vmatpush2.msra.mxu0 0.0
    %276 = vmatprep.subr.mxu0 0.0
    %277 = vmatpush2.msra.mxu0 0.0
    %278 = vmatprep.subr.mxu0 0.0
    %279 = vmatpush2.msra.mxu0 0.0
    %280 = vmatprep.subr.mxu0 0.0
    %281 = vmatpush2.msra.mxu0 0.0
    %282 = vmatprep.subr.mxu0 0.0
    %283 = vmatpush2.msra.mxu0 0.0
    %284 = vmatprep.subr.mxu0 0.0
    %285 = vmatpush2.msra.mxu0 0.0
    %286 = vmatprep.subr.mxu0 0.0
    %287 = vmatpush2.msra.mxu0 0.0
    %288 = vmatprep.subr.mxu0 0.0
    %289 = vmatpush2.msra.mxu0 0.0
    %290 = vmatprep.subr.mxu0 0.0
    %291 = vmatpush2.msra.mxu0 0.0
    %292 = vmatprep.subr.mxu0 0.0
    %293 = vmatpush2.msra.mxu0 0.0
    %294 = vmatprep.subr.mxu0 0.0
    %295 = vmatpush2.msra.mxu0 0.0
    %296 = vmatprep.subr.mxu0 0.0
    %297 = vmatpush2.msra.mxu0 0.0
    %298 = vmatprep.subr.mxu0 0.0
    %299 = vmatpush2.msra.mxu0 0.0
    %300 = vmatprep.subr.mxu0 0.0
    %301 = vmatpush2.msra.mxu0 0.0
    %302 = vmatprep.mubr.f32.mxu0 0.0
    %303 = vmatmul.mubr.f32.gmra.mxu0 %v222
    %v304 = vpop.f32.mrf.mxu0
    %v305 = vadd.f32 %v184, %v304
    %v306 = vpop.f32.mrf.mxu0
    %307 = vmatprep.mubr.f32.mxu0 0.0
    %308 = vmatmul.mubr.f32.gmra.mxu0 %v224
    %v309 = vpop.f32.mrf.mxu0
    %v310 = vadd.f32 %v189, %v309
    %v311 = vpop.f32.mrf.mxu0
    %312 = vmatprep.mubr.f32.mxu0 0.0
    %313 = vmatmul.mubr.f32.gmra.mxu0 %v226
    %v314 = vpop.f32.mrf.mxu0
    %v315 = vadd.f32 %v194, %v314
    %v316 = vpop.f32.mrf.mxu0
    %317 = vmatprep.mubr.f32.mxu0 0.0
    %318 = vmatmul.mubr.f32.gmra.mxu0 %v228
    %v319 = vpop.f32.mrf.mxu0
    %v320 = vadd.f32 %v199, %v319
    %v321 = vpop.f32.mrf.mxu0
    %322 = vmatprep.mubr.f32.mxu0 0.0
    %323 = vmatmul.mubr.f32.gmra.mxu0 %v230
    %v324 = vpop.f32.mrf.mxu0
    %v325 = vadd.f32 %v204, %v324
    %v326 = vpop.f32.mrf.mxu0
    %327 = vmatprep.mubr.f32.mxu0 0.0
    %328 = vmatmul.mubr.f32.gmra.mxu0 %v232
    %v329 = vpop.f32.mrf.mxu0
    %v330 = vadd.f32 %v209, %v329
    %v331 = vpop.f32.mrf.mxu0
    %332 = vmatprep.mubr.f32.mxu0 0.0
    %333 = vmatmul.mubr.f32.gmra.mxu0 %v234
    %v334 = vpop.f32.mrf.mxu0
    %v335 = vadd.f32 %v214, %v334
    %v336 = vpop.f32.mrf.mxu0
    %337 = vmatprep.mubr.f32.mxu0 0.0
    %338 = vmatmul.mubr.f32.gmra.mxu0 %v236
    %v339 = vpop.f32.mrf.mxu0
    %v340 = vadd.f32 %v219, %v339
    %v341 = vpop.f32.mrf.mxu0
    %342 = vdwg.mxu0
    %s343 = scalar_lea.vmem [#allocation2], 64
    %v344 = vld [vmem:[%s343] sm:$0xff]
    %v345 = vld [vmem:[%s343 + $0x8] sm:$0xff]
    %v346 = vld [vmem:[%s343 + $0x10] sm:$0xff]
    %v347 = vld [vmem:[%s343 + $0x18] sm:$0xff]
    %vm348 = vcmask 1045504
    %v349 = vrot.slane %v55, 2
    %v350 = vrot.slane %v56, 2
    %v351 = vsel %vm348, %v349, %v350
    %v352 = vrot.slane %v57, 2
    %v353 = vsel %vm348, %v350, %v352
    %v354 = vrot.slane %v58, 2
    %v355 = vsel %vm348, %v352, %v354
    %v356 = vrot.slane %v59, 2
    %v357 = vsel %vm348, %v354, %v356
    %v358 = vrot.slane %v60, 2
    %v359 = vsel %vm348, %v356, %v358
    %v360 = vrot.slane %v61, 2
    %v361 = vsel %vm348, %v358, %v360
    %v362 = vrot.slane %v62, 2
    %v363 = vsel %vm348, %v360, %v362
    %v364 = vrot.slane %v63, 2
    %v365 = vsel %vm348, %v362, %v364
    %v366 = vsel %vm100, %v351, 0
    %v368 = vsel %vm100, %v353, 0
    %v370 = vsel %vm100, %v355, 0
    %v372 = vsel %vm100, %v357, 0
    %v374 = vsel %vm100, %v359, 0
    %v376 = vsel %vm100, %v361, 0
    %v378 = vsel %vm100, %v363, 0
    %v380 = vsel %vm100, %v365, 0
    %382 = vmatprep.subr.mxu0 0.0
    %383 = vmatpush1.msra.mxu0 0.0
    %384 = vmatprep.subr.mxu0 0.0
    %385 = vmatpush1.msra.mxu0 0.0
    %386 = vmatprep.subr.mxu0 0.0
    %387 = vmatpush1.msra.mxu0 0.0
    %388 = vmatprep.subr.mxu0 0.0
    %389 = vmatpush1.msra.mxu0 0.0
    %390 = vmatprep.subr.mxu0 0.0
    %391 = vmatpush1.msra.mxu0 0.0
    %392 = vmatprep.subr.mxu0 0.0
    %393 = vmatpush1.msra.mxu0 0.0
    %394 = vmatprep.subr.mxu0 0.0
    %395 = vmatpush1.msra.mxu0 0.0
    %396 = vmatprep.subr.mxu0 0.0
    %397 = vmatpush1.msra.mxu0 0.0
    %398 = vmatprep.subr.mxu0 0.0
    %399 = vmatpush1.msra.mxu0 0.0
    %400 = vmatprep.subr.mxu0 0.0
    %401 = vmatpush1.msra.mxu0 0.0
    %402 = vmatprep.subr.mxu0 0.0
    %403 = vmatpush1.msra.mxu0 0.0
    %404 = vmatprep.subr.mxu0 0.0
    %405 = vmatpush1.msra.mxu0 0.0
    %406 = vmatprep.subr.mxu0 0.0
    %407 = vmatpush1.msra.mxu0 %v347
    %408 = vmatprep.subr.mxu0 0.0
    %409 = vmatpush1.msra.mxu0 %v346
    %410 = vmatprep.subr.mxu0 0.0
    %411 = vmatpush1.msra.mxu0 %v345
    %412 = vmatprep.subr.mxu0 0.0
    %413 = vmatpush1.msra.mxu0 %v344
    %414 = vmatprep.subr.mxu0 0.0
    %415 = vmatpush2.msra.mxu0 0.0
    %416 = vmatprep.subr.mxu0 0.0
    %417 = vmatpush2.msra.mxu0 0.0
    %418 = vmatprep.subr.mxu0 0.0
    %419 = vmatpush2.msra.mxu0 0.0
    %420 = vmatprep.subr.mxu0 0.0
    %421 = vmatpush2.msra.mxu0 0.0
    %422 = vmatprep.subr.mxu0 0.0
    %423 = vmatpush2.msra.mxu0 0.0
    %424 = vmatprep.subr.mxu0 0.0
    %425 = vmatpush2.msra.mxu0 0.0
    %426 = vmatprep.subr.mxu0 0.0
    %427 = vmatpush2.msra.mxu0 0.0
    %428 = vmatprep.subr.mxu0 0.0
    %429 = vmatpush2.msra.mxu0 0.0
    %430 = vmatprep.subr.mxu0 0.0
    %431 = vmatpush2.msra.mxu0 0.0
    %432 = vmatprep.subr.mxu0 0.0
    %433 = vmatpush2.msra.mxu0 0.0
    %434 = vmatprep.subr.mxu0 0.0
    %435 = vmatpush2.msra.mxu0 0.0
    %436 = vmatprep.subr.mxu0 0.0
    %437 = vmatpush2.msra.mxu0 0.0
    %438 = vmatprep.subr.mxu0 0.0
    %439 = vmatpush2.msra.mxu0 0.0
    %440 = vmatprep.subr.mxu0 0.0
    %441 = vmatpush2.msra.mxu0 0.0
    %442 = vmatprep.subr.mxu0 0.0
    %443 = vmatpush2.msra.mxu0 0.0
    %444 = vmatprep.subr.mxu0 0.0
    %445 = vmatpush2.msra.mxu0 0.0
    %446 = vmatprep.mubr.f32.mxu0 0.0
    %447 = vmatmul.mubr.f32.gmra.mxu0 %v366
    %v448 = vpop.f32.mrf.mxu0
    %v449 = vadd.f32 0.0, %v448
    %v450 = vpop.f32.mrf.mxu0
    %451 = vmatprep.mubr.f32.mxu0 0.0
    %452 = vmatmul.mubr.f32.gmra.mxu0 %v368
    %v453 = vpop.f32.mrf.mxu0
    %v454 = vadd.f32 0.0, %v453
    %v455 = vpop.f32.mrf.mxu0
    %456 = vmatprep.mubr.f32.mxu0 0.0
    %457 = vmatmul.mubr.f32.gmra.mxu0 %v370
    %v458 = vpop.f32.mrf.mxu0
    %v459 = vadd.f32 0.0, %v458
    %v460 = vpop.f32.mrf.mxu0
    %461 = vmatprep.mubr.f32.mxu0 0.0
    %462 = vmatmul.mubr.f32.gmra.mxu0 %v372
    %v463 = vpop.f32.mrf.mxu0
    %v464 = vadd.f32 0.0, %v463
    %v465 = vpop.f32.mrf.mxu0
    %466 = vmatprep.mubr.f32.mxu0 0.0
    %467 = vmatmul.mubr.f32.gmra.mxu0 %v374
    %v468 = vpop.f32.mrf.mxu0
    %v469 = vadd.f32 0.0, %v468
    %v470 = vpop.f32.mrf.mxu0
    %471 = vmatprep.mubr.f32.mxu0 0.0
    %472 = vmatmul.mubr.f32.gmra.mxu0 %v376
    %v473 = vpop.f32.mrf.mxu0
    %v474 = vadd.f32 0.0, %v473
    %v475 = vpop.f32.mrf.mxu0
    %476 = vmatprep.mubr.f32.mxu0 0.0
    %477 = vmatmul.mubr.f32.gmra.mxu0 %v378
    %v478 = vpop.f32.mrf.mxu0
    %v479 = vadd.f32 0.0, %v478
    %v480 = vpop.f32.mrf.mxu0
    %481 = vmatprep.mubr.f32.mxu0 0.0
    %482 = vmatmul.mubr.f32.gmra.mxu0 %v380
    %v483 = vpop.f32.mrf.mxu0
    %v484 = vadd.f32 0.0, %v483
    %v485 = vpop.f32.mrf.mxu0
    %486 = vdwg.mxu0
    %v487 = vadd.f32 %v305, %v449
    %v488 = vadd.f32 %v310, %v454
    %v489 = vadd.f32 %v315, %v459
    %v490 = vadd.f32 %v320, %v464
    %v491 = vadd.f32 %v325, %v469
    %v492 = vadd.f32 %v330, %v474
    %v493 = vadd.f32 %v335, %v479
    %v494 = vadd.f32 %v340, %v484
    %s495 = scalar_lea.vmem [#allocation2], 96
    %v496 = vld [vmem:[%s495] sm:$0xff]
    %v497 = vld [vmem:[%s495 + $0x8] sm:$0xff]
    %v498 = vld [vmem:[%s495 + $0x10] sm:$0xff]
    %v499 = vld [vmem:[%s495 + $0x18] sm:$0xff]
    %vm500 = vcmask 1044480
    %v501 = vrot.slane %v55, 3
    %v502 = vrot.slane %v56, 3
    %v503 = vsel %vm500, %v501, %v502
    %v504 = vrot.slane %v57, 3
    %v505 = vsel %vm500, %v502, %v504
    %v506 = vrot.slane %v58, 3
    %v507 = vsel %vm500, %v504, %v506
    %v508 = vrot.slane %v59, 3
    %v509 = vsel %vm500, %v506, %v508
    %v510 = vrot.slane %v60, 3
    %v511 = vsel %vm500, %v508, %v510
    %v512 = vrot.slane %v61, 3
    %v513 = vsel %vm500, %v510, %v512
    %v514 = vrot.slane %v62, 3
    %v515 = vsel %vm500, %v512, %v514
    %v516 = vrot.slane %v63, 3
    %v517 = vsel %vm500, %v514, %v516
    %v518 = vsel %vm100, %v503, 0
    %v520 = vsel %vm100, %v505, 0
    %v522 = vsel %vm100, %v507, 0
    %v524 = vsel %vm100, %v509, 0
    %v526 = vsel %vm100, %v511, 0
    %v528 = vsel %vm100, %v513, 0
    %v530 = vsel %vm100, %v515, 0
    %v532 = vsel %vm100, %v517, 0
    %534 = vmatprep.subr.mxu0 0.0
    %535 = vmatpush1.msra.mxu0 0.0
    %536 = vmatprep.subr.mxu0 0.0
    %537 = vmatpush1.msra.mxu0 0.0
    %538 = vmatprep.subr.mxu0 0.0
    %539 = vmatpush1.msra.mxu0 0.0
    %540 = vmatprep.subr.mxu0 0.0
    %541 = vmatpush1.msra.mxu0 0.0
    %542 = vmatprep.subr.mxu0 0.0
    %543 = vmatpush1.msra.mxu0 0.0
    %544 = vmatprep.subr.mxu0 0.0
    %545 = vmatpush1.msra.mxu0 0.0
    %546 = vmatprep.subr.mxu0 0.0
    %547 = vmatpush1.msra.mxu0 0.0
    %548 = vmatprep.subr.mxu0 0.0
    %549 = vmatpush1.msra.mxu0 0.0
    %550 = vmatprep.subr.mxu0 0.0
    %551 = vmatpush1.msra.mxu0 0.0
    %552 = vmatprep.subr.mxu0 0.0
    %553 = vmatpush1.msra.mxu0 0.0
    %554 = vmatprep.subr.mxu0 0.0
    %555 = vmatpush1.msra.mxu0 0.0
    %556 = vmatprep.subr.mxu0 0.0
    %557 = vmatpush1.msra.mxu0 0.0
    %558 = vmatprep.subr.mxu0 0.0
    %559 = vmatpush1.msra.mxu0 %v499
    %560 = vmatprep.subr.mxu0 0.0
    %561 = vmatpush1.msra.mxu0 %v498
    %562 = vmatprep.subr.mxu0 0.0
    %563 = vmatpush1.msra.mxu0 %v497
    %564 = vmatprep.subr.mxu0 0.0
    %565 = vmatpush1.msra.mxu0 %v496
    %566 = vmatprep.subr.mxu0 0.0
    %567 = vmatpush2.msra.mxu0 0.0
    %568 = vmatprep.subr.mxu0 0.0
    %569 = vmatpush2.msra.mxu0 0.0
    %570 = vmatprep.subr.mxu0 0.0
    %571 = vmatpush2.msra.mxu0 0.0
    %572 = vmatprep.subr.mxu0 0.0
    %573 = vmatpush2.msra.mxu0 0.0
    %574 = vmatprep.subr.mxu0 0.0
    %575 = vmatpush2.msra.mxu0 0.0
    %576 = vmatprep.subr.mxu0 0.0
    %577 = vmatpush2.msra.mxu0 0.0
    %578 = vmatprep.subr.mxu0 0.0
    %579 = vmatpush2.msra.mxu0 0.0
    %580 = vmatprep.subr.mxu0 0.0
    %581 = vmatpush2.msra.mxu0 0.0
    %582 = vmatprep.subr.mxu0 0.0
    %583 = vmatpush2.msra.mxu0 0.0
    %584 = vmatprep.subr.mxu0 0.0
    %585 = vmatpush2.msra.mxu0 0.0
    %586 = vmatprep.subr.mxu0 0.0
    %587 = vmatpush2.msra.mxu0 0.0
    %588 = vmatprep.subr.mxu0 0.0
    %589 = vmatpush2.msra.mxu0 0.0
    %590 = vmatprep.subr.mxu0 0.0
    %591 = vmatpush2.msra.mxu0 0.0
    %592 = vmatprep.subr.mxu0 0.0
    %593 = vmatpush2.msra.mxu0 0.0
    %594 = vmatprep.subr.mxu0 0.0
    %595 = vmatpush2.msra.mxu0 0.0
    %596 = vmatprep.subr.mxu0 0.0
    %597 = vmatpush2.msra.mxu0 0.0
    %598 = vmatprep.mubr.f32.mxu0 0.0
    %599 = vmatmul.mubr.f32.gmra.mxu0 %v518
    %v600 = vpop.f32.mrf.mxu0
    %v601 = vadd.f32 0.0, %v600
    %v602 = vpop.f32.mrf.mxu0
    %603 = vmatprep.mubr.f32.mxu0 0.0
    %604 = vmatmul.mubr.f32.gmra.mxu0 %v520
    %v605 = vpop.f32.mrf.mxu0
    %v606 = vadd.f32 0.0, %v605
    %v607 = vpop.f32.mrf.mxu0
    %608 = vmatprep.mubr.f32.mxu0 0.0
    %609 = vmatmul.mubr.f32.gmra.mxu0 %v522
    %v610 = vpop.f32.mrf.mxu0
    %v611 = vadd.f32 0.0, %v610
    %v612 = vpop.f32.mrf.mxu0
    %613 = vmatprep.mubr.f32.mxu0 0.0
    %614 = vmatmul.mubr.f32.gmra.mxu0 %v524
    %v615 = vpop.f32.mrf.mxu0
    %v616 = vadd.f32 0.0, %v615
    %v617 = vpop.f32.mrf.mxu0
    %618 = vmatprep.mubr.f32.mxu0 0.0
    %619 = vmatmul.mubr.f32.gmra.mxu0 %v526
    %v620 = vpop.f32.mrf.mxu0
    %v621 = vadd.f32 0.0, %v620
    %v622 = vpop.f32.mrf.mxu0
    %623 = vmatprep.mubr.f32.mxu0 0.0
    %624 = vmatmul.mubr.f32.gmra.mxu0 %v528
    %v625 = vpop.f32.mrf.mxu0
    %v626 = vadd.f32 0.0, %v625
    %v627 = vpop.f32.mrf.mxu0
    %628 = vmatprep.mubr.f32.mxu0 0.0
    %629 = vmatmul.mubr.f32.gmra.mxu0 %v530
    %v630 = vpop.f32.mrf.mxu0
    %v631 = vadd.f32 0.0, %v630
    %v632 = vpop.f32.mrf.mxu0
    %633 = vmatprep.mubr.f32.mxu0 0.0
    %634 = vmatmul.mubr.f32.gmra.mxu0 %v532
    %v635 = vpop.f32.mrf.mxu0
    %v636 = vadd.f32 0.0, %v635
    %v637 = vpop.f32.mrf.mxu0
    %638 = vdwg.mxu0
    %v639 = vadd.f32 %v487, %v601
    %v640 = vadd.f32 %v488, %v606
    %v641 = vadd.f32 %v489, %v611
    %v642 = vadd.f32 %v490, %v616
    %v643 = vadd.f32 %v491, %v621
    %v644 = vadd.f32 %v492, %v626
    %v645 = vadd.f32 %v493, %v631
    %v646 = vadd.f32 %v494, %v636
    %s647 = scalar_lea.vmem [#allocation2], 128
    %v648 = vld [vmem:[%s647] sm:$0xff]
    %v649 = vld [vmem:[%s647 + $0x8] sm:$0xff]
    %v650 = vld [vmem:[%s647 + $0x10] sm:$0xff]
    %v651 = vld [vmem:[%s647 + $0x18] sm:$0xff]
    %vm652 = vcmask 1043456
    %v653 = vrot.slane %v55, 4
    %v654 = vrot.slane %v56, 4
    %v655 = vsel %vm652, %v653, %v654
    %v656 = vrot.slane %v57, 4
    %v657 = vsel %vm652, %v654, %v656
    %v658 = vrot.slane %v58, 4
    %v659 = vsel %vm652, %v656, %v658
    %v660 = vrot.slane %v59, 4
    %v661 = vsel %vm652, %v658, %v660
    %v662 = vrot.slane %v60, 4
    %v663 = vsel %vm652, %v660, %v662
    %v664 = vrot.slane %v61, 4
    %v665 = vsel %vm652, %v662, %v664
    %v666 = vrot.slane %v62, 4
    %v667 = vsel %vm652, %v664, %v666
    %v668 = vrot.slane %v63, 4
    %v669 = vsel %vm652, %v666, %v668
    %v670 = vsel %vm100, %v655, 0
    %v672 = vsel %vm100, %v657, 0
    %v674 = vsel %vm100, %v659, 0
    %v676 = vsel %vm100, %v661, 0
    %v678 = vsel %vm100, %v663, 0
    %v680 = vsel %vm100, %v665, 0
    %v682 = vsel %vm100, %v667, 0
    %v684 = vsel %vm100, %v669, 0
    %686 = vmatprep.subr.mxu0 0.0
    %687 = vmatpush1.msra.mxu0 0.0
    %688 = vmatprep.subr.mxu0 0.0
    %689 = vmatpush1.msra.mxu0 0.0
    %690 = vmatprep.subr.mxu0 0.0
    %691 = vmatpush1.msra.mxu0 0.0
    %692 = vmatprep.subr.mxu0 0.0
    %693 = vmatpush1.msra.mxu0 0.0
    %694 = vmatprep.subr.mxu0 0.0
    %695 = vmatpush1.msra.mxu0 0.0
    %696 = vmatprep.subr.mxu0 0.0
    %697 = vmatpush1.msra.mxu0 0.0
    %698 = vmatprep.subr.mxu0 0.0
    %699 = vmatpush1.msra.mxu0 0.0
    %700 = vmatprep.subr.mxu0 0.0
    %701 = vmatpush1.msra.mxu0 0.0
    %702 = vmatprep.subr.mxu0 0.0
    %703 = vmatpush1.msra.mxu0 0.0
    %704 = vmatprep.subr.mxu0 0.0
    %705 = vmatpush1.msra.mxu0 0.0
    %706 = vmatprep.subr.mxu0 0.0
    %707 = vmatpush1.msra.mxu0 0.0
    %708 = vmatprep.subr.mxu0 0.0
    %709 = vmatpush1.msra.mxu0 0.0
    %710 = vmatprep.subr.mxu0 0.0
    %711 = vmatpush1.msra.mxu0 %v651
    %712 = vmatprep.subr.mxu0 0.0
    %713 = vmatpush1.msra.mxu0 %v650
    %714 = vmatprep.subr.mxu0 0.0
    %715 = vmatpush1.msra.mxu0 %v649
    %716 = vmatprep.subr.mxu0 0.0
    %717 = vmatpush1.msra.mxu0 %v648
    %718 = vmatprep.subr.mxu0 0.0
    %719 = vmatpush2.msra.mxu0 0.0
    %720 = vmatprep.subr.mxu0 0.0
    %721 = vmatpush2.msra.mxu0 0.0
    %722 = vmatprep.subr.mxu0 0.0
    %723 = vmatpush2.msra.mxu0 0.0
    %724 = vmatprep.subr.mxu0 0.0
    %725 = vmatpush2.msra.mxu0 0.0
    %726 = vmatprep.subr.mxu0 0.0
    %727 = vmatpush2.msra.mxu0 0.0
    %728 = vmatprep.subr.mxu0 0.0
    %729 = vmatpush2.msra.mxu0 0.0
    %730 = vmatprep.subr.mxu0 0.0
    %731 = vmatpush2.msra.mxu0 0.0
    %732 = vmatprep.subr.mxu0 0.0
    %733 = vmatpush2.msra.mxu0 0.0
    %734 = vmatprep.subr.mxu0 0.0
    %735 = vmatpush2.msra.mxu0 0.0
    %736 = vmatprep.subr.mxu0 0.0
    %737 = vmatpush2.msra.mxu0 0.0
    %738 = vmatprep.subr.mxu0 0.0
    %739 = vmatpush2.msra.mxu0 0.0
    %740 = vmatprep.subr.mxu0 0.0
    %741 = vmatpush2.msra.mxu0 0.0
    %742 = vmatprep.subr.mxu0 0.0
    %743 = vmatpush2.msra.mxu0 0.0
    %744 = vmatprep.subr.mxu0 0.0
    %745 = vmatpush2.msra.mxu0 0.0
    %746 = vmatprep.subr.mxu0 0.0
    %747 = vmatpush2.msra.mxu0 0.0
    %748 = vmatprep.subr.mxu0 0.0
    %749 = vmatpush2.msra.mxu0 0.0
    %750 = vmatprep.mubr.f32.mxu0 0.0
    %751 = vmatmul.mubr.f32.gmra.mxu0 %v670
    %v752 = vpop.f32.mrf.mxu0
    %v753 = vadd.f32 0.0, %v752
    %v754 = vpop.f32.mrf.mxu0
    %755 = vmatprep.mubr.f32.mxu0 0.0
    %756 = vmatmul.mubr.f32.gmra.mxu0 %v672
    %v757 = vpop.f32.mrf.mxu0
    %v758 = vadd.f32 0.0, %v757
    %v759 = vpop.f32.mrf.mxu0
    %760 = vmatprep.mubr.f32.mxu0 0.0
    %761 = vmatmul.mubr.f32.gmra.mxu0 %v674
    %v762 = vpop.f32.mrf.mxu0
    %v763 = vadd.f32 0.0, %v762
    %v764 = vpop.f32.mrf.mxu0
    %765 = vmatprep.mubr.f32.mxu0 0.0
    %766 = vmatmul.mubr.f32.gmra.mxu0 %v676
    %v767 = vpop.f32.mrf.mxu0
    %v768 = vadd.f32 0.0, %v767
    %v769 = vpop.f32.mrf.mxu0
    %770 = vmatprep.mubr.f32.mxu0 0.0
    %771 = vmatmul.mubr.f32.gmra.mxu0 %v678
    %v772 = vpop.f32.mrf.mxu0
    %v773 = vadd.f32 0.0, %v772
    %v774 = vpop.f32.mrf.mxu0
    %775 = vmatprep.mubr.f32.mxu0 0.0
    %776 = vmatmul.mubr.f32.gmra.mxu0 %v680
    %v777 = vpop.f32.mrf.mxu0
    %v778 = vadd.f32 0.0, %v777
    %v779 = vpop.f32.mrf.mxu0
    %780 = vmatprep.mubr.f32.mxu0 0.0
    %781 = vmatmul.mubr.f32.gmra.mxu0 %v682
    %v782 = vpop.f32.mrf.mxu0
    %v783 = vadd.f32 0.0, %v782
    %v784 = vpop.f32.mrf.mxu0
    %785 = vmatprep.mubr.f32.mxu0 0.0
    %786 = vmatmul.mubr.f32.gmra.mxu0 %v684
    %v787 = vpop.f32.mrf.mxu0
    %v788 = vadd.f32 0.0, %v787
    %v789 = vpop.f32.mrf.mxu0
    %790 = vdwg.mxu0
    %v791 = vadd.f32 %v639, %v753
    %v792 = vadd.f32 %v640, %v758
    %v793 = vadd.f32 %v641, %v763
    %v794 = vadd.f32 %v642, %v768
    %v795 = vadd.f32 %v643, %v773
    %v796 = vadd.f32 %v644, %v778
    %v797 = vadd.f32 %v645, %v783
    %v798 = vadd.f32 %v646, %v788
    %v799 = vld [vmem:[%s2] sm:$0x1]
    %v801 = vlaneseq
    %v802 = vshrl.u32 %v801, 7
    %v803 = vsub.s32 0, %v802
    %v804 = vrot.slane %v799, %v803
    %v806 = vadd.f32 %v791, %v804
    %v807 = vadd.f32 %v792, %v804
    %v808 = vadd.f32 %v793, %v804
    %v809 = vadd.f32 %v794, %v804
    %v810 = vadd.f32 %v795, %v804
    %v811 = vadd.f32 %v796, %v804
    %v812 = vadd.f32 %v797, %v804
    %v813 = vadd.f32 %v798, %v804
    %v814 = vlaneseq
    %v815 = vshrl.u32 %v814, 7
    %v816 = vadd.s32 %v815, 8
    %v817 = vadd.s32 %v815, 16
    %v818 = vadd.s32 %v815, 24
    %v819 = vadd.s32 %v815, 32
    %v820 = vadd.s32 %v815, 40
    %v821 = vadd.s32 %v815, 48
    %v822 = vadd.s32 %v815, 56
    %vm823 = vcmp.lt.s32.totalorder %v815, 0
    %v824 = vsub.s32 0, %v815
    %v825 = vsel %vm823, %v824, %v815
    %v826 = vshrl.u32 %v825, 4
    %v827 = vand.u32 %v825, 15
    %v828 = vsub.s32 0, %v827
    %v829 = vsel %vm823, %v828, %v827
    %vm830 = vcmp.lt.s32.totalorder %v816, 0
    %v831 = vsub.s32 0, %v816
    %v832 = vsel %vm830, %v831, %v816
    %v833 = vshrl.u32 %v832, 4
    %v834 = vand.u32 %v832, 15
    %v835 = vsub.s32 0, %v834
    %v836 = vsel %vm830, %v835, %v834
    %vm837 = vcmp.lt.s32.totalorder %v817, 0
    %v838 = vsub.s32 0, %v817
    %v839 = vsel %vm837, %v838, %v817
    %v840 = vshrl.u32 %v839, 4
    %v841 = vand.u32 %v839, 15
    %v842 = vsub.s32 0, %v841
    %v843 = vsel %vm837, %v842, %v841
    %vm844 = vcmp.lt.s32.totalorder %v818, 0
    %v845 = vsub.s32 0, %v818
    %v846 = vsel %vm844, %v845, %v818
    %v847 = vshrl.u32 %v846, 4
    %v848 = vand.u32 %v846, 15
    %v849 = vsub.s32 0, %v848
    %v850 = vsel %vm844, %v849, %v848
    %vm851 = vcmp.lt.s32.totalorder %v819, 0
    %v852 = vsub.s32 0, %v819
    %v853 = vsel %vm851, %v852, %v819
    %v854 = vshrl.u32 %v853, 4
    %v855 = vand.u32 %v853, 15
    %v856 = vsub.s32 0, %v855
    %v857 = vsel %vm851, %v856, %v855
    %vm858 = vcmp.lt.s32.totalorder %v820, 0
    %v859 = vsub.s32 0, %v820
    %v860 = vsel %vm858, %v859, %v820
    %v861 = vshrl.u32 %v860, 4
    %v862 = vand.u32 %v860, 15
    %v863 = vsub.s32 0, %v862
    %v864 = vsel %vm858, %v863, %v862
    %vm865 = vcmp.lt.s32.totalorder %v821, 0
    %v866 = vsub.s32 0, %v821
    %v867 = vsel %vm865, %v866, %v821
    %v868 = vshrl.u32 %v867, 4
    %v869 = vand.u32 %v867, 15
    %v870 = vsub.s32 0, %v869
    %v871 = vsel %vm865, %v870, %v869
    %vm872 = vcmp.lt.s32.totalorder %v822, 0
    %v873 = vsub.s32 0, %v822
    %v874 = vsel %vm872, %v873, %v822
    %v875 = vshrl.u32 %v874, 4
    %v876 = vand.u32 %v874, 15
    %v877 = vsub.s32 0, %v876
    %v878 = vsel %vm872, %v877, %v876
    %vm879 = vcmp.ne.s32.totalorder %v829, 0
    %vm880 = vcmp.ne.s32.totalorder %v836, 0
    %vm881 = vcmp.ne.s32.totalorder %v843, 0
    %vm882 = vcmp.ne.s32.totalorder %v850, 0
    %vm883 = vcmp.ne.s32.totalorder %v857, 0
    %vm884 = vcmp.ne.s32.totalorder %v864, 0
    %vm885 = vcmp.ne.s32.totalorder %v871, 0
    %vm886 = vcmp.ne.s32.totalorder %v878, 0
    %vm887 = vcmp.lt.s32.totalorder %v829, 0
    %vm888 = vcmp.lt.s32.totalorder %v836, 0
    %vm889 = vcmp.lt.s32.totalorder %v843, 0
    %vm890 = vcmp.lt.s32.totalorder %v850, 0
    %vm891 = vcmp.lt.s32.totalorder %v857, 0
    %vm892 = vcmp.lt.s32.totalorder %v864, 0
    %vm893 = vcmp.lt.s32.totalorder %v871, 0
    %vm894 = vcmp.lt.s32.totalorder %v878, 0
    %vm895 = vmand %vm887, %vm879
    %vm896 = vmand %vm888, %vm880
    %vm897 = vmand %vm889, %vm881
    %vm898 = vmand %vm890, %vm882
    %vm899 = vmand %vm891, %vm883
    %vm900 = vmand %vm892, %vm884
    %vm901 = vmand %vm893, %vm885
    %vm902 = vmand %vm894, %vm886
    %v903 = vadd.s32 %v829, 16
    %v904 = vadd.s32 %v836, 16
    %v905 = vadd.s32 %v843, 16
    %v906 = vadd.s32 %v850, 16
    %v907 = vadd.s32 %v857, 16
    %v908 = vadd.s32 %v864, 16
    %v909 = vadd.s32 %v871, 16
    %v910 = vadd.s32 %v878, 16
    %v911 = vsel %vm895, %v903, %v829
    %v912 = vsel %vm896, %v904, %v836
    %v913 = vsel %vm897, %v905, %v843
    %v914 = vsel %vm898, %v906, %v850
    %v915 = vsel %vm899, %v907, %v857
    %v916 = vsel %vm900, %v908, %v864
    %v917 = vsel %vm901, %v909, %v871
    %v918 = vsel %vm902, %v910, %v878
    %v919 = vld [vmem:[%s3] sm:$0x1]
    %v920 = vlaneseq
    %v921 = vshrl.u32 %v920, 7
    %v922 = vsub.s32 0, %v921
    %v923 = vrot.slane %v919, %v922
    %vm924 = vcmp.lt.s32.totalorder %v911, %v923
    %vm925 = vcmp.lt.s32.totalorder %v912, %v923
    %vm926 = vcmp.lt.s32.totalorder %v913, %v923
    %vm927 = vcmp.lt.s32.totalorder %v914, %v923
    %vm928 = vcmp.lt.s32.totalorder %v915, %v923
    %vm929 = vcmp.lt.s32.totalorder %v916, %v923
    %vm930 = vcmp.lt.s32.totalorder %v917, %v923
    %vm931 = vcmp.lt.s32.totalorder %v918, %v923
    %v932 = vld [vmem:[%s4] sm:$0x1]
    %v933 = vsel %vm924, %v806, 0.0
    %v934 = vsel %vm925, %v807, 0.0
    %v935 = vsel %vm926, %v808, 0.0
    %v936 = vsel %vm927, %v809, 0.0
    %v937 = vsel %vm928, %v810, 0.0
    %v938 = vsel %vm929, %v811, 0.0
    %v939 = vsel %vm930, %v812, 0.0
    %v940 = vsel %vm931, %v813, 0.0
    %v941 = vadd.f32 %v933, %v934
    %v942 = vadd.f32 %v941, %v935
    %v943 = vadd.f32 %v942, %v936
    %v944 = vadd.f32 %v943, %v937
    %v945 = vadd.f32 %v944, %v938
    %v946 = vadd.f32 %v945, %v939
    %v947 = vadd.f32 %v946, %v940
    %v948 = vrot.slane %v947, 4
    %v949 = vadd.f32 %v947, %v948
    %v950 = vrot.slane %v949, 2
    %v951 = vadd.f32 %v949, %v950
    %v952 = vrot.slane %v951, 1
    %v953 = vadd.f32 %v951, %v952
    %v954 = vmul.f32 %v953, %v932
    %v955 = vmul.f32 %v933, %v933
    %v956 = vmul.f32 %v934, %v934
    %v957 = vmul.f32 %v935, %v935
    %v958 = vmul.f32 %v936, %v936
    %v959 = vmul.f32 %v937, %v937
    %v960 = vmul.f32 %v938, %v938
    %v961 = vmul.f32 %v939, %v939
    %v962 = vmul.f32 %v940, %v940
    %v963 = vadd.f32 %v955, %v956
    %v964 = vadd.f32 %v963, %v957
    %v965 = vadd.f32 %v964, %v958
    %v966 = vadd.f32 %v965, %v959
    %v967 = vadd.f32 %v966, %v960
    %v968 = vadd.f32 %v967, %v961
    %v969 = vadd.f32 %v968, %v962
    %v970 = vrot.slane %v969, 4
    %v971 = vadd.f32 %v969, %v970
    %v972 = vrot.slane %v971, 2
    %v973 = vadd.f32 %v971, %v972
    %v974 = vrot.slane %v973, 1
    %v975 = vadd.f32 %v973, %v974
    %v976 = vmul.f32 %v975, %v932
    %v977 = vmul.f32 %v954, %v954
    %v978 = vsub.f32 %v976, %v977
    %v979 = vmax.f32 %v978, 0.0
    %v980 = vadd.f32 %v979, 1e-05
    %v981 = vrsqrt.pop %v980
    %v982 = vsel %vm924, %v806, -inf
    %v983 = vsel %vm925, %v807, -inf
    %v984 = vsel %vm926, %v808, -inf
    %v985 = vsel %vm927, %v809, -inf
    %v986 = vsel %vm928, %v810, -inf
    %v987 = vsel %vm929, %v811, -inf
    %v988 = vsel %vm930, %v812, -inf
    %v989 = vsel %vm931, %v813, -inf
    %v990 = vmax.f32 %v982, %v983
    %v991 = vrot.slane %v990, 4
    %v992 = vmax.f32 %v990, %v991
    %v993 = vrot.slane %v992, 2
    %v994 = vmax.f32 %v992, %v993
    %v995 = vrot.slane %v994, 1
    %v996 = vmax.f32 %v994, %v995
    %v997 = vmax.f32 %v984, %v985
    %v998 = vrot.slane %v997, 4
    %v999 = vmax.f32 %v997, %v998
    %v1000 = vrot.slane %v999, 2
    %v1001 = vmax.f32 %v999, %v1000
    %v1002 = vrot.slane %v1001, 1
    %v1003 = vmax.f32 %v1001, %v1002
    %v1004 = vmax.f32 %v986, %v987
    %v1005 = vrot.slane %v1004, 4
    %v1006 = vmax.f32 %v1004, %v1005
    %v1007 = vrot.slane %v1006, 2
    %v1008 = vmax.f32 %v1006, %v1007
    %v1009 = vrot.slane %v1008, 1
    %v1010 = vmax.f32 %v1008, %v1009
    %v1011 = vmax.f32 %v988, %v989
    %v1012 = vrot.slane %v1011, 4
    %v1013 = vmax.f32 %v1011, %v1012
    %v1014 = vrot.slane %v1013, 2
    %v1015 = vmax.f32 %v1013, %v1014
    %v1016 = vrot.slane %v1015, 1
    %v1017 = vmax.f32 %v1015, %v1016
    %vm1018 = vcmask 1040384
    %v1019 = vsel %vm1018, %v996, %v1003
    %vm1020 = vcmask 1041408
    %v1021 = vsel %vm1020, %v1019, %v1010
    %vm1022 = vcmask 1042432
    %v1023 = vsel %vm1022, %v1021, %v1017
    %v1024 = vmul.f32 %v981, 2.0
    %v1025 = vlaneseq
    %v1026 = vshrl.u32 %v1025, 7
    %v1027 = vsub.s32 0, %v1026
    %v1028 = vrot.slane %v954, %v1027
    %v1029 = vsub.f32 %v1023, %v1028
    %v1030 = vmax.f32 %v1029, 0.0
    %v1031 = vlaneseq
    %v1032 = vshrl.u32 %v1031, 7
    %v1033 = vsub.s32 0, %v1032
    %v1034 = vrot.slane %v1024, %v1033
    %v1035 = vmul.f32 %v1034, %v1030
    %v1036 = vld [vmem:[#allocation5] sm:$0xff]
    %v1037 = vld [vmem:[#allocation5 + $0x8] sm:$0xff]
    %v1038 = vld [vmem:[#allocation5 + $0x10] sm:$0xff]
    %v1039 = vld [vmem:[#allocation5 + $0x18] sm:$0xff]
    %v1040 = vld [vmem:[#allocation5 + $0x20] sm:$0xff]
    %v1041 = vld [vmem:[#allocation5 + $0x28] sm:$0xff]
    %v1042 = vld [vmem:[#allocation5 + $0x30] sm:$0xff]
    %v1043 = vld [vmem:[#allocation5 + $0x38] sm:$0xff]
    %v1044 = vld [vmem:[#allocation5 + $0x40] sm:$0xff]
    %v1045 = vld [vmem:[#allocation5 + $0x48] sm:$0xff]
    %v1046 = vld [vmem:[#allocation5 + $0x50] sm:$0xff]
    %v1047 = vld [vmem:[#allocation5 + $0x58] sm:$0xff]
    %v1048 = vld [vmem:[#allocation5 + $0x60] sm:$0xff]
    %v1049 = vld [vmem:[#allocation5 + $0x68] sm:$0xff]
    %v1050 = vld [vmem:[#allocation5 + $0x70] sm:$0xff]
    %v1051 = vld [vmem:[#allocation5 + $0x78] sm:$0xff]
    %v1052 = vld [vmem:[%s6] sm:$0x1]
    %v1054 = vlaneseq
    %v1055 = vshrl.u32 %v1054, 7
    %v1056 = vsub.s32 0, %v1055
    %v1057 = vrot.slane %v1052, %v1056
    %1059 = vmatprep.subr.mxu0 0.0
    %1060 = vmatpush1.msra.mxu0 %v1051
    %1061 = vmatprep.subr.mxu0 0.0
    %1062 = vmatpush1.msra.mxu0 %v1050
    %1063 = vmatprep.subr.mxu0 0.0
    %1064 = vmatpush1.msra.mxu0 %v1049
    %1065 = vmatprep.subr.mxu0 0.0
    %1066 = vmatpush1.msra.mxu0 %v1048
    %1067 = vmatprep.subr.mxu0 0.0
    %1068 = vmatpush1.msra.mxu0 %v1047
    %1069 = vmatprep.subr.mxu0 0.0
    %1070 = vmatpush1.msra.mxu0 %v1046
    %1071 = vmatprep.subr.mxu0 0.0
    %1072 = vmatpush1.msra.mxu0 %v1045
    %1073 = vmatprep.subr.mxu0 0.0
    %1074 = vmatpush1.msra.mxu0 %v1044
    %1075 = vmatprep.subr.mxu0 0.0
    %1076 = vmatpush1.msra.mxu0 %v1043
    %1077 = vmatprep.subr.mxu0 0.0
    %1078 = vmatpush1.msra.mxu0 %v1042
    %1079 = vmatprep.subr.mxu0 0.0
    %1080 = vmatpush1.msra.mxu0 %v1041
    %1081 = vmatprep.subr.mxu0 0.0
    %1082 = vmatpush1.msra.mxu0 %v1040
    %1083 = vmatprep.subr.mxu0 0.0
    %1084 = vmatpush1.msra.mxu0 %v1039
    %1085 = vmatprep.subr.mxu0 0.0
    %1086 = vmatpush1.msra.mxu0 %v1038
    %1087 = vmatprep.subr.mxu0 0.0
    %1088 = vmatpush1.msra.mxu0 %v1037
    %1089 = vmatprep.subr.mxu0 0.0
    %1090 = vmatpush1.msra.mxu0 %v1036
    %1091 = vmatprep.subr.mxu0 0.0
    %1092 = vmatpush2.msra.mxu0 0.0
    %1093 = vmatprep.subr.mxu0 0.0
    %1094 = vmatpush2.msra.mxu0 0.0
    %1095 = vmatprep.subr.mxu0 0.0
    %1096 = vmatpush2.msra.mxu0 0.0
    %1097 = vmatprep.subr.mxu0 0.0
    %1098 = vmatpush2.msra.mxu0 0.0
    %1099 = vmatprep.subr.mxu0 0.0
    %1100 = vmatpush2.msra.mxu0 0.0
    %1101 = vmatprep.subr.mxu0 0.0
    %1102 = vmatpush2.msra.mxu0 0.0
    %1103 = vmatprep.subr.mxu0 0.0
    %1104 = vmatpush2.msra.mxu0 0.0
    %1105 = vmatprep.subr.mxu0 0.0
    %1106 = vmatpush2.msra.mxu0 0.0
    %1107 = vmatprep.subr.mxu0 0.0
    %1108 = vmatpush2.msra.mxu0 0.0
    %1109 = vmatprep.subr.mxu0 0.0
    %1110 = vmatpush2.msra.mxu0 0.0
    %1111 = vmatprep.subr.mxu0 0.0
    %1112 = vmatpush2.msra.mxu0 0.0
    %1113 = vmatprep.subr.mxu0 0.0
    %1114 = vmatpush2.msra.mxu0 0.0
    %1115 = vmatprep.subr.mxu0 0.0
    %1116 = vmatpush2.msra.mxu0 0.0
    %1117 = vmatprep.subr.mxu0 0.0
    %1118 = vmatpush2.msra.mxu0 0.0
    %1119 = vmatprep.subr.mxu0 0.0
    %1120 = vmatpush2.msra.mxu0 0.0
    %1121 = vmatprep.subr.mxu0 0.0
    %1122 = vmatpush2.msra.mxu0 0.0
    %1123 = vmatprep.mubr.f32.mxu0 0.0
    %1124 = vmatmul.mubr.f32.gmra.mxu0 %v1035
    %v1125 = vpop.f32.mrf.mxu0
    %v1126 = vadd.f32 %v1057, %v1125
    %v1127 = vpop.f32.mrf.mxu0
    %1128 = vdwg.mxu0
    %1129 = vst [vmem:[#allocation7] sm:$0xf] %v1126
    // Predicated region
    $region38: #{tpu_custom_call.1} parent=1 // pred_check
      _
    $region39: #{tpu_custom_call.1} parent=1 // pred_check_branch
      %1131 = sbr.rel (0) target = $region41
    $region40: #{tpu_custom_call.1} parent=1 // pred_region
      %s1133 = ssub.s32 64, 64
      %1134 = vsyncadd [#allocation4], %s1133
      %s1136 = sshll.u32 [#allocation7], 4
      %s1137 = int_to_ptr.vmem [resolvable:$true] %s1136
      %1139 = dma.vmem_to_hbm [thread:$0]  %s1137, 64, %s7, [#allocation4]
    $region41: #{tpu_custom_call.1} parent=1 // pred_fallthru
      _
    // Predicated region
    $region42: #{tpu_custom_call.1} parent=1 // pred_check
      _
    $region43: #{tpu_custom_call.1} parent=1 // pred_check_branch
      %1141 = sbr.rel (0) target = $region45
    $region44: #{tpu_custom_call.1} parent=1 // pred_region
      %1142 = dma.done [#allocation4], 64
    $region45: #{tpu_custom_call.1} parent=1 // pred_fallthru
      _
    %1143 = vsyncpa [#allocation3], 1
    %1144 = vsyncpa [#allocation6], 1
    %1145 = vsyncpa [#allocation4], 1

</llo_original>
